<compile_context>
chip_gen: v5e
topology: v5e:2x2
jax: 0.10.0
libtpu: 0.0.40
codegen_flags: <defaults>
</compile_context>

<pallas_src>
import jax
import jax.numpy as jnp
from jax.experimental import pallas as pl
from jax.experimental.pallas import tpu as pltpu

_LANES = 128
_MAX_TILE_ROWS = 4096        # (4096, 128) f32 = 2 MiB/buffer; 3 operands x 2 bufs = 12 MiB
_MIN_PALLAS_ELEMS = 1 << 20  # below this a single fused XLA elementwise is already optimal


def _rel_trans_loss_kernel(gt_ref, out_ref, valid_ref, loss_ref):
    """Lane-dense elementwise tile: |out - gt[c]| * valid.

    gt_ref:  (3,) f32 in SMEM (whole array, no blocking).
    out_ref, valid_ref, loss_ref: (tile_rows, 128) f32 VMEM tiles.
    The gt broadcast is reconstructed from the flat element index: c = flat % 3.
    The extra int/select work is pure VPU and hides under the DMA.
    """
    tile_rows, lanes = loss_ref.shape
    row = jax.lax.broadcasted_iota(jnp.int32, (tile_rows, lanes), 0)
    lane = jax.lax.broadcasted_iota(jnp.int32, (tile_rows, lanes), 1)
    flat = (pl.program_id(0) * tile_rows + row) * lanes + lane
    c = flat % 3

    g0 = gt_ref[0]
    g1 = gt_ref[1]
    g2 = gt_ref[2]
    gt = jnp.where(c == 0, g0, jnp.where(c == 1, g1, g2))

    loss_ref[...] = jnp.abs(out_ref[...] - gt) * valid_ref[...]


def _reference(rel_trans_out, rel_trans_gt, rel_trans_valid):
    return jnp.abs(rel_trans_out - rel_trans_gt[None, :]) * rel_trans_valid


def rel_trans_loss(rel_trans_out, rel_trans_gt, rel_trans_valid, *, force_pallas=False):
    """Pallas implementation of RelTransLoss.forward."""
    rel_trans_out = jnp.asarray(rel_trans_out, jnp.float32)
    rel_trans_gt = jnp.asarray(rel_trans_gt, jnp.float32)
    rel_trans_valid = jnp.asarray(rel_trans_valid, jnp.float32)

    B, C = rel_trans_out.shape
    n = B * C
    aligned = (n % _LANES) == 0

    # Default: use the fused XLA elementwise (exactly at HBM roofline) unless the
    # problem is large AND already lane-alignable without a pad copy.
    use_pallas = force_pallas or (aligned and n >= _MIN_PALLAS_ELEMS)
    if not use_pallas:
        return _reference(rel_trans_out, rel_trans_gt, rel_trans_valid)

    padded = pl.cdiv(n, _LANES) * _LANES
    rows = padded // _LANES

    def _as_slab(x):
        x = x.reshape(-1)
        if padded != n:
            # Compat branch (force_pallas on unaligned n only): one pad copy.
            x = jnp.pad(x, (0, padded - n))
        # Contiguous row-major reshape -> bitcast, no extra HBM pass.
        return x.reshape(rows, _LANES)

    out_2d = _as_slab(rel_trans_out)
    valid_2d = _as_slab(rel_trans_valid)

    # Tile sizing: cap at 2 MiB/buffer, keep >= 2 grid steps when there is enough
    # work (v7x: shard rows across both TensorCores), keep sublane dim a multiple
    # of 8 (or the full array extent for tiny inputs).
    if rows <= 8:
        tile_rows = rows                       # block == full array dims
    else:
        tile_rows = min(_MAX_TILE_ROWS,
                        max(8, pl.next_power_of_2(pl.cdiv(rows, 2))))
    num_tiles = pl.cdiv(rows, tile_rows)       # partial last block is masked by Pallas

    spec = pl.BlockSpec((tile_rows, _LANES), lambda i: (i, 0))

    loss_2d = pl.pallas_call(
        _rel_trans_loss_kernel,
        out_shape=jax.ShapeDtypeStruct((rows, _LANES), jnp.float32),
        grid=(num_tiles,),
        in_specs=[
            pl.BlockSpec(memory_space=pltpu.MemorySpace.SMEM),  # gt (3,) scalars
            spec,                                               # rel_trans_out slab
            spec,                                               # rel_trans_valid slab
        ],
        out_specs=spec,
        compiler_params=pltpu.CompilerParams(
            dimension_semantics=("parallel",)),   # shard row tiles across v7x's 2 TCs
    )(rel_trans_gt, out_2d, valid_2d)
    # TODO(synk): input_output_aliases={1: 0} would drop one output allocation, but
    # it donates the caller's rel_trans_out buffer; left out as a minor, risky win.

    loss = loss_2d.reshape(-1)
    if padded != n:
        loss = loss[:n]
    return loss.reshape(B, C)


if __name__ == "__main__":
    key = jax.random.PRNGKey(0)
    k1, k2, k3 = jax.random.split(key, 3)
    gt = jax.random.normal(k2, (3,), dtype=jnp.float32)

    def make(B, ko, kv):
        out = jax.random.normal(ko, (B, 3), dtype=jnp.float32)
        valid = (jax.random.uniform(kv, (B, 3)) > 0.3).astype(jnp.float32)
        return out, valid

    # 1) Small batch -> fused-XLA fast path (default).
    out8, valid8 = make(8, k1, k3)
    ref8 = _reference(out8, gt, valid8)
    got8 = jax.block_until_ready(rel_trans_loss(out8, gt, valid8))
    assert got8.shape == (8, 3)
    assert jnp.allclose(got8, ref8, atol=1e-6), "fast path mismatch vs reference"

    # 2) Lane-aligned batch (B*3 % 128 == 0): zero-copy Pallas path, single tile.
    k4, k5 = jax.random.split(k1)
    out128, valid128 = make(128, k4, k5)
    ref128 = _reference(out128, gt, valid128)
    got128 = jax.block_until_ready(
        rel_trans_loss(out128, gt, valid128, force_pallas=True))
    assert got128.shape == (128, 3)
    assert jnp.allclose(got128, ref128, atol=1e-6), "pallas aligned path mismatch"

    # 3) Lane-aligned batch with a partial (masked) last row tile:
    #    B=640 -> n=1920, rows=15, tile_rows=8, grid=(2,).
    k6, k7 = jax.random.split(k4)
    out640, valid640 = make(640, k6, k7)
    ref640 = _reference(out640, gt, valid640)
    got640 = jax.block_until_ready(
        rel_trans_loss(out640, gt, valid640, force_pallas=True))
    assert got640.shape == (640, 3)
    assert jnp.allclose(got640, ref640, atol=1e-6), "pallas masked-tile path mismatch"

    # 4) Unaligned batch (B*3 % 128 != 0) under force_pallas -> compat pad branch.
    k8, k9 = jax.random.split(k6)
    out100, valid100 = make(100, k8, k9)
    ref100 = _reference(out100, gt, valid100)
    got100 = jax.block_until_ready(
        rel_trans_loss(out100, gt, valid100, force_pallas=True))
    assert got100.shape == (100, 3)
    assert jnp.allclose(got100, ref100, atol=1e-6), "pallas padded compat path mismatch"

    print("KERNEL_OK")
</pallas_src>

<mosaic_0001>
module attributes {stable_mosaic.version = 11 : i64} {
  func.func @_rel_trans_loss_kernel(%arg0: i32, %arg1: memref<3xf32, #tpu.memory_space<smem>>, %arg2: memref<3x128xf32, #tpu.memory_space<vmem>>, %arg3: memref<3x128xf32, #tpu.memory_space<vmem>>, %arg4: memref<3x128xf32, #tpu.memory_space<vmem>>) attributes {dimension_semantics = [#tpu.dimension_semantics<parallel>], iteration_bounds = array<i64: 1>, scalar_prefetch = 0 : i64, scratch_operands = 0 : i64, tpu.core_type = #tpu.core_type<tc>, window_params = [{transform_indices = @transform_0, window_bounds = array<i64: 3>}, {transform_indices = @transform_1, window_bounds = array<i64: 3, 128>}, {transform_indices = @transform_2, window_bounds = array<i64: 3, 128>}, {transform_indices = @transform_3, window_bounds = array<i64: 3, 128>}]} {
    %0 = tpu.iota {dimensions = array<i32: 0>} : vector<3x128xi32>
    %1 = tpu.iota {dimensions = array<i32: 1>} : vector<3x128xi32>
    %c3_i32 = arith.constant 3 : i32
    %2 = arith.muli %arg0, %c3_i32 : i32
    %3 = vector.broadcast %2 : i32 to vector<3x128xi32>
    %4 = arith.addi %3, %0 : vector<3x128xi32>
    %c128_i32 = arith.constant 128 : i32
    %5 = vector.broadcast %c128_i32 : i32 to vector<3x128xi32>
    %6 = arith.muli %4, %5 : vector<3x128xi32>
    %7 = arith.addi %6, %1 : vector<3x128xi32>
    %c3_i32_0 = arith.constant 3 : i32
    %c0_i32 = arith.constant 0 : i32
    %8 = arith.cmpi eq, %c3_i32_0, %c0_i32 : i32
    %c1_i32 = arith.constant 1 : i32
    %9 = arith.select %8, %c1_i32, %c3_i32_0 : i32
    %10 = vector.broadcast %9 : i32 to vector<3x128xi32>
    %11 = arith.remsi %7, %10 : vector<3x128xi32>
    %c0_i32_1 = arith.constant 0 : i32
    %12 = vector.broadcast %c0_i32_1 : i32 to vector<3x128xi32>
    %13 = arith.cmpi ne, %11, %12 : vector<3x128xi32>
    %c0_i32_2 = arith.constant 0 : i32
    %14 = vector.broadcast %c0_i32_2 : i32 to vector<3x128xi32>
    %15 = arith.cmpi slt, %11, %14 : vector<3x128xi32>
    %c0_i32_3 = arith.constant 0 : i32
    %16 = arith.cmpi slt, %9, %c0_i32_3 : i32
    %17 = vector.broadcast %16 : i1 to vector<3x128xi1>
    %18 = vector.broadcast %17 : vector<3x128xi1> to vector<3x128xi1>
    %19 = arith.xori %15, %18 : vector<3x128xi1>
    %20 = arith.andi %19, %13 : vector<3x128xi1>
    %21 = vector.broadcast %9 : i32 to vector<3x128xi32>
    %22 = arith.addi %11, %21 : vector<3x128xi32>
    %23 = arith.select %20, %22, %11 : vector<3x128xi1>, vector<3x128xi32>
    %c0 = arith.constant 0 : index
    %24 = memref.load %arg1[%c0] : memref<3xf32, #tpu.memory_space<smem>>
    %c1 = arith.constant 1 : index
    %25 = memref.load %arg1[%c1] : memref<3xf32, #tpu.memory_space<smem>>
    %c2 = arith.constant 2 : index
    %26 = memref.load %arg1[%c2] : memref<3xf32, #tpu.memory_space<smem>>
    %c0_i32_4 = arith.constant 0 : i32
    %27 = vector.broadcast %c0_i32_4 : i32 to vector<3x128xi32>
    %28 = arith.cmpi eq, %23, %27 : vector<3x128xi32>
    %c1_i32_5 = arith.constant 1 : i32
    %29 = vector.broadcast %c1_i32_5 : i32 to vector<3x128xi32>
    %30 = arith.cmpi eq, %23, %29 : vector<3x128xi32>
    %31 = vector.broadcast %25 : f32 to vector<3x128xf32>
    %32 = vector.broadcast %26 : f32 to vector<3x128xf32>
    %33 = arith.select %30, %31, %32 : vector<3x128xi1>, vector<3x128xf32>
    %34 = vector.broadcast %24 : f32 to vector<3x128xf32>
    %35 = arith.select %28, %34, %33 : vector<3x128xi1>, vector<3x128xf32>
    %c0_6 = arith.constant 0 : index
    %c0_7 = arith.constant 0 : index
    %36 = vector.load %arg2[%c0_6, %c0_7] : memref<3x128xf32, #tpu.memory_space<vmem>>, vector<3x128xf32>
    %37 = arith.subf %36, %35 : vector<3x128xf32>
    %38 = math.absf %37 : vector<3x128xf32>
    %c0_8 = arith.constant 0 : index
    %c0_9 = arith.constant 0 : index
    %39 = vector.load %arg3[%c0_8, %c0_9] : memref<3x128xf32, #tpu.memory_space<vmem>>, vector<3x128xf32>
    %40 = arith.mulf %38, %39 : vector<3x128xf32>
    %c0_10 = arith.constant 0 : index
    %c0_11 = arith.constant 0 : index
    %41 = vector.load %arg4[%c0_10, %c0_11] : memref<3x128xf32, #tpu.memory_space<vmem>>, vector<3x128xf32>
    tpu.vector_store %arg4[%c0_10, %c0_11], %40 {strides = array<i32>} : memref<3x128xf32, #tpu.memory_space<vmem>>, vector<3x128xf32>,
    return
  }
  func.func @transform_0(%arg0: i32) -> i32 {
    %c0_i32 = arith.constant 0 : i32
    %c0_i32_0 = arith.constant 0 : i32
    return %c0_i32 : i32
  }
  func.func @transform_1(%arg0: i32) -> (i32, i32) {
    %c0_i32 = arith.constant 0 : i32
    %c0_i32_0 = arith.constant 0 : i32
    return %arg0, %c0_i32 : i32, i32
  }
  func.func @transform_2(%arg0: i32) -> (i32, i32) {
    %c0_i32 = arith.constant 0 : i32
    %c0_i32_0 = arith.constant 0 : i32
    return %arg0, %c0_i32 : i32, i32
  }
  func.func @transform_3(%arg0: i32) -> (i32, i32) {
    %c0_i32 = arith.constant 0 : i32
    %c0_i32_0 = arith.constant 0 : i32
    return %arg0, %c0_i32 : i32, i32
  }
}

</mosaic_0001>

<llo_original>
// kernel: tpu_custom_call.1
$region0: #{tpu_custom_call.1}
  #allocation0 [shape = 'u32[]', space=smem, size = 0x4, offset = 0x4, fixed_abs, tag = 'smem constant byte address 0x4 - core index']
  #allocation1 [shape = 'u32[72,128]{1,0:T(1,128)}', space=vmem, size = 0x9000, scoped, tag = 'internal scratch']
  %s0 = inlined_call_operand.hbm [shape: f32[3], index: 0, kind: input, shape index: {}]
  %s1 = inlined_call_operand.hbm [shape: f32[3,128], index: 1, kind: input, shape index: {}]
  %s2 = inlined_call_operand.hbm [shape: f32[3,128], index: 2, kind: input, shape index: {}]
  %s3 = inlined_call_operand.hbm [shape: f32[3,128], index: 3, kind: output, shape index: {}]
  %s4 = sld [smem:[#allocation0]]
  $region34: #{tpu_custom_call.1} parent=0
    _
  %s6 = ssub.s32 1, %s4
  %s7 = scalar_select 0, %s6, %s4
  $region1: #{tpu_custom_call.1} parent=0
    #allocation2 [shape = 'u8[512]{0}', space=smem, size = 0x200, scoped, tag = 'input window, operand 0, single buffered']
    #allocation3 [shape = 's32[1]{0}', space=sflag, size = 0x4, scoped, tag = 'scoped memory for tpu_custom_call.1']
    #allocation4 [shape = 's32[1]{0}', space=sflag, size = 0x4, scoped, tag = 'scoped memory for tpu_custom_call.1']
    #allocation5 [shape = 's32[1]{0}', space=sflag, size = 0x4, scoped, tag = 'scoped memory for tpu_custom_call.1']
    #allocation6 [shape = 'u8[2048]{0}', space=vmem, size = 0x800, scoped, tag = 'input window, operand 1, single buffered']
    #allocation7 [shape = 'u8[2048]{0}', space=vmem, size = 0x800, scoped, tag = 'input window, operand 2, single buffered']
    #allocation8 [shape = 's32[1]{0}', space=sflag, size = 0x4, scoped, tag = 'scoped memory for tpu_custom_call.1']
    #allocation9 [shape = 'u8[2048]{0}', space=vmem, size = 0x800, scoped, tag = 'output window, operand 0, single buffered']
    %8 = vsyncpa [#allocation5], 0
    %9 = vsyncpa [#allocation3], 0
    %10 = vsyncpa [#allocation8], 0
    %11 = vsyncpa [#allocation4], 0
    // Predicated region
    $region2: #{tpu_custom_call.1} parent=1 // pred_check
      _
    $region3: #{tpu_custom_call.1} parent=1 // pred_check_branch
      %13 = sbr.rel (0) target = $region5
    $region4: #{tpu_custom_call.1} parent=1 // pred_region
      %15 = vsyncadd [#allocation5], 0
      %s17 = sshll.u32 %s0, 4
      %s18 = int_to_ptr.hbm [resolvable:$true] %s17
      %20 = dma.hbm_to_smem %s18, 16, [#allocation2], [#allocation5]
    $region5: #{tpu_custom_call.1} parent=1 // pred_fallthru
      _
    // Predicated region
    $region6: #{tpu_custom_call.1} parent=1 // pred_check
      _
    $region7: #{tpu_custom_call.1} parent=1 // pred_check_branch
      %22 = sbr.rel (0) target = $region9
    $region8: #{tpu_custom_call.1} parent=1 // pred_region
      %24 = vsyncadd [#allocation3], 0
      %s26 = sshll.u32 %s1, 4
      %s27 = int_to_ptr.hbm [resolvable:$true] %s26
      %s28 = sshll.u32 [#allocation6], 4
      %s29 = int_to_ptr.vmem [resolvable:$true] %s28
      %31 = dma.hbm_to_vmem [thread:$0]  %s27, 64, %s29, [#allocation3]
    $region9: #{tpu_custom_call.1} parent=1 // pred_fallthru
      _
    // Predicated region
    $region10: #{tpu_custom_call.1} parent=1 // pred_check
      _
    $region11: #{tpu_custom_call.1} parent=1 // pred_check_branch
      %33 = sbr.rel (0) target = $region13
    $region12: #{tpu_custom_call.1} parent=1 // pred_region
      %35 = vsyncadd [#allocation8], 0
      %s37 = sshll.u32 %s2, 4
      %s38 = int_to_ptr.hbm [resolvable:$true] %s37
      %s39 = sshll.u32 [#allocation7], 4
      %s40 = int_to_ptr.vmem [resolvable:$true] %s39
      %42 = dma.hbm_to_vmem [thread:$0]  %s38, 64, %s40, [#allocation8]
    $region13: #{tpu_custom_call.1} parent=1 // pred_fallthru
      _
    // Predicated region
    $region14: #{tpu_custom_call.1} parent=1 // pred_check
      _
    $region15: #{tpu_custom_call.1} parent=1 // pred_check_branch
      %44 = sbr.rel (0) target = $region17
    $region16: #{tpu_custom_call.1} parent=1 // pred_region
      %46 = dma.done [#allocation5], 16
    $region17: #{tpu_custom_call.1} parent=1 // pred_fallthru
      _
    // Predicated region
    $region18: #{tpu_custom_call.1} parent=1 // pred_check
      _
    $region19: #{tpu_custom_call.1} parent=1 // pred_check_branch
      %48 = sbr.rel (0) target = $region21
    $region20: #{tpu_custom_call.1} parent=1 // pred_region
      %50 = dma.done [#allocation3], 64
    $region21: #{tpu_custom_call.1} parent=1 // pred_fallthru
      _
    // Predicated region
    $region22: #{tpu_custom_call.1} parent=1 // pred_check
      _
    $region23: #{tpu_custom_call.1} parent=1 // pred_check_branch
      %52 = sbr.rel (0) target = $region25
    $region24: #{tpu_custom_call.1} parent=1 // pred_region
      %54 = dma.done [#allocation8], 64
    $region25: #{tpu_custom_call.1} parent=1 // pred_fallthru
      _
    %55 = sfence
    %v56 = vlaneseq
    %v57 = vshrl.u32 %v56, 7
    %v58 = vlaneseq
    %v59 = vand.u32 %v58, 127
    %s60 = smul.u32 0, 3
    %v61 = vstv %s60
    %v62 = vadd.s32 %v61, %v57
    %v63 = vmul.u32 %v62, 128
    %v64 = vadd.s32 %v63, %v59
    %vm65 = vcmp.lt.s32.totalorder %v64, 0
    %v66 = vsub.s32 0, %v64
    %v67 = vsel %vm65, %v66, %v64
    %v68 = vand.u32 %v67, 65535
    %v69 = vshrl.u32 %v67, 16
    %v71 = vmul.u32 %v68, 43691
    %v72 = vmul.u32 %v68, 43690
    %v73 = vmul.u32 %v69, 43691
    %v74 = vmul.u32 %v69, 43690
    %v75 = vshll.u32 %v72, 16
    %v76 = vshrl.u32 %v72, 16
    %v77 = vshll.u32 %v73, 16
    %v78 = vshrl.u32 %v73, 16
    %vm79 = vc.u32 %v71, %v75
    %v80 = vsel %vm79, 1, 0
    %v81 = vadd.s32 %v71, %v75
    %v82 = vadd.s32 %v74, %v80
    %vm83 = vc.u32 %v81, %v77
    %v84 = vsel %vm83, 1, 0
    %v85 = vadd.s32 %v81, %v77
    %v86 = vadd.s32 %v82, %v84
    %v87 = vadd.s32 %v86, %v76
    %v88 = vadd.s32 %v87, %v78
    %v89 = vshrl.u32 %v88, 1
    %v90 = vmul.u32 %v89, 3
    %v91 = vsub.s32 %v67, %v90
    %v92 = vsub.s32 0, %v91
    %v93 = vsel %vm65, %v92, %v91
    %vm94 = vcmp.ne.s32.totalorder %v93, 0
    %vm95 = vcmp.lt.s32.totalorder %v93, 0
    %vm96 = vmand %vm95, %vm94
    %v97 = vadd.s32 %v93, 3
    %v98 = vsel %vm96, %v97, %v93
    %s99 = sld [smem:[#allocation2]]
    %s100 = sld [smem:[#allocation2 + $0x1]]
    %s101 = sld [smem:[#allocation2 + $0x2]]
    %vm102 = vcmp.eq.s32.totalorder %v98, 0
    %vm103 = vcmp.eq.s32.totalorder %v98, 1
    %v104 = vstv %s100
    %v105 = vstv %s101
    %v106 = vsel %vm103, %v104, %v105
    %v107 = vstv %s99
    %v108 = vsel %vm102, %v107, %v106
    %v109 = vld [vmem:[#allocation6] sm:$0x7]
    %v110 = vsub.f32 %v109, %v108
    %v111 = vand.u32 2147483647, %v110
    %v112 = vld [vmem:[#allocation7] sm:$0x7]
    %v113 = vmul.f32 %v111, %v112
    %114 = vst [vmem:[#allocation9] sm:$0x7] %v113
    // Predicated region
    $region26: #{tpu_custom_call.1} parent=1 // pred_check
      _
    $region27: #{tpu_custom_call.1} parent=1 // pred_check_branch
      %116 = sbr.rel (0) target = $region29
    $region28: #{tpu_custom_call.1} parent=1 // pred_region
      %118 = vsyncadd [#allocation4], 0
      %s120 = sshll.u32 [#allocation9], 4
      %s121 = int_to_ptr.vmem [resolvable:$true] %s120
      %s122 = sshll.u32 %s3, 4
      %s123 = int_to_ptr.hbm [resolvable:$true] %s122
      %125 = dma.vmem_to_hbm [thread:$0]  %s121, 64, %s123, [#allocation4]
    $region29: #{tpu_custom_call.1} parent=1 // pred_fallthru
      _
    // Predicated region
    $region30: #{tpu_custom_call.1} parent=1 // pred_check
      _
    $region31: #{tpu_custom_call.1} parent=1 // pred_check_branch
      %127 = sbr.rel (0) target = $region33
    $region32: #{tpu_custom_call.1} parent=1 // pred_region
      %129 = dma.done [#allocation4], 64
    $region33: #{tpu_custom_call.1} parent=1 // pred_fallthru
      _
    %130 = vsyncpa [#allocation3], 1
    %131 = vsyncpa [#allocation8], 1
    %132 = vsyncpa [#allocation4], 1
    %133 = vsyncpa [#allocation5], 1

</llo_original>
